<compile_context>
chip_gen: v5e
topology: v5e:2x2
jax: 0.10.0
libtpu: 0.0.40
codegen_flags: <defaults>
</compile_context>

<pallas_src>
import numpy as np
import jax
import jax.numpy as jnp
from jax.experimental import pallas as pl
from jax.experimental.pallas import tpu as pltpu


# ----------------------------------------------------------------------------
# Host-side glue: PIL-style bicubic (a = -0.5, antialiased) weight matrices,
# with CenterCrop folded in by slicing output rows.
# ----------------------------------------------------------------------------
def _bicubic_filter(x, a=-0.5):
    x = np.abs(x)
    x2, x3 = x * x, x * x * x
    return np.where(
        x <= 1.0,
        (a + 2.0) * x3 - (a + 3.0) * x2 + 1.0,
        np.where(x < 2.0, a * x3 - 5.0 * a * x2 + 8.0 * a * x - 4.0 * a, 0.0),
    )


def _resize_weight_matrix(in_size, out_size):
    """(out_size, in_size) row-normalized bicubic weights, PIL-style."""
    scale = in_size / out_size
    filterscale = max(scale, 1.0)          # antialias when downsampling
    support = 2.0 * filterscale            # bicubic support = 2
    A = np.zeros((out_size, in_size), dtype=np.float32)
    for i in range(out_size):
        center = (i + 0.5) * scale
        lo = max(int(center - support + 0.5), 0)
        hi = min(int(center + support + 0.5), in_size)
        j = np.arange(lo, hi, dtype=np.float64)
        w = _bicubic_filter((j + 0.5 - center) / filterscale)
        A[i, lo:hi] = (w / w.sum()).astype(np.float32)
    return A


def _resize_output_size(h, w, size):
    """torchvision Resize(int): resize the shorter edge to `size`."""
    if h <= w:
        return size, int(size * w / h)
    return int(size * h / w), size


def _build_matrices(H, W, image_size):
    """Float32 (S, H) and (W, S) resize+center-crop matrices."""
    new_h, new_w = _resize_output_size(H, W, image_size)
    # TODO(synk): CenterCrop padding path (resized edge < crop size) not implemented.
    assert new_h >= image_size and new_w >= image_size
    A_h_full = _resize_weight_matrix(H, new_h)              # (new_h, H)
    A_w_full = _resize_weight_matrix(W, new_w)              # (new_w, W)
    top = int(round((new_h - image_size) / 2.0))
    left = int(round((new_w - image_size) / 2.0))
    A_h = A_h_full[top:top + image_size]                    # (S, H)
    A_wT = A_w_full[left:left + image_size].T.copy()        # (W, S)
    return A_h, A_wT


# ----------------------------------------------------------------------------
# Generation / VMEM queries (trace time, host side).
# ----------------------------------------------------------------------------
def _tpu_generation():
    try:
        kind = jax.devices()[0].device_kind.lower()
    except Exception:
        return "unknown"
    if "v5" in kind:
        return "v5"
    if "v6" in kind:
        return "v6"
    if "v7" in kind or "7x" in kind:
        return "v7"
    return "unknown"


def _vmem_capacity_bytes(gen):
    try:
        return int(pltpu.get_tpu_info().vmem_capacity_bytes)
    except Exception:
        # Conservative fallbacks if the query is unavailable.
        return {"v5": 128 << 20, "v6": 128 << 20, "v7": 64 << 20}.get(gen, 64 << 20)


def _estimate_vmem(H, W, S, ts, *, wide_first, cached, bf16_convert):
    """Per-step VMEM working set (bytes), including conversion temporaries."""
    img = 2 * H * W                                        # u8 channel, 2 buffers
    conv = (2 * H * W) if bf16_convert else (4 * H * W + 2 * H * W)
    ah = 2 * (2 * ts * H)                                  # bf16 A_h block, 2 buffers
    awt = 2 * W * S                                        # bf16 A_w^T, single buffer
    out = 2 * 4 * ts * S                                   # f32 output block, 2 buffers
    if wide_first:
        inter = 4 * H * S + 2 * H * S                      # f32 (H,S) + bf16 copy
        cache = 2 * H * S if cached else 0
    else:
        inter = 4 * ts * W + 2 * ts * W                    # f32 (ts,W) + bf16 copy
        cache = 2 * H * W if cached else 0
    return int(1.25 * (img + conv + ah + awt + out + inter + cache))


def _pick_row_tile(S, H, W, gen):
    """Generation-aware output-row tile (must divide S; multiple of 16)."""
    divisors = [t for t in range(16, S + 1, 16) if S % t == 0]
    if not divisors:
        return S                                           # full extent is always legal
    if gen in ("v6", "v7"):
        # Prefer a single row block (fewer grid steps, no cache needed, wide-first
        # directly) when the rb=1 working set sits comfortably under the scoped
        # VMEM default; otherwise split rows (the VMEM cache keeps splits cheap).
        est_full = _estimate_vmem(H, W, S, S, wide_first=(W > H), cached=False,
                                  bf16_convert=True)
        if (S % 16 == 0) and est_full <= int(0.6 * (32 << 20)):
            return S
        small = [t for t in divisors if t <= 128]
        return max(small) if small else max(divisors)
    # v5e / unknown: 128x128 MXU, 16 MiB scoped default -> keep tiles <= 128.
    small = [t for t in divisors if t <= 128]
    return max(small) if small else min(divisors)


def _single_buffered_spec(shape, index_map):
    """BlockSpec with single buffering (block index constant -> second pipeline
    buffer is pure VMEM waste).  Falls back to default buffering if this jax
    version does not accept pipeline_mode."""
    try:
        return pl.BlockSpec(shape, index_map, pipeline_mode=pl.Buffered(1))
    except Exception:
        return pl.BlockSpec(shape, index_map)


# ----------------------------------------------------------------------------
# Pallas kernel
# ----------------------------------------------------------------------------
def _make_transform_kernel(wide_first, use_cache, bf16_convert):
    def convert(x_u8_2d):
        # uint8 -> pixel-valued float: reinterpret as int8 (signed conversion
        # path only) and fix the wrap-around with one select.  Pixels 0..255
        # are exact in bf16; 1/255 is folded into the epilogue scale.
        xi = pltpu.bitcast(x_u8_2d, jnp.int8)
        if bf16_convert:                                   # v6e / v7x: bf16 VALU
            xb = xi.astype(jnp.bfloat16)
            return jnp.where(xb < 0, xb + 256.0, xb)
        xf = xi.astype(jnp.float32)                        # v5e: no bf16 VALU
        return jnp.where(xf < 0.0, xf + 256.0, xf).astype(jnp.bfloat16)

    if use_cache:
        def kernel(scale_ref, bias_ref, x_ref, ah_ref, awt_ref, o_ref, cache_ref):
            c = pl.program_id(0)
            r = pl.program_id(1)

            # (Re)build the per-channel cache only on the first row block.  The
            # row-block axis is "arbitrary", so r==0 always runs on the same
            # core (and before) the blocks that reuse the cache.
            @pl.when(r == 0)
            def _():
                xb = convert(x_ref[0])                                     # (H, W) bf16
                if wide_first:
                    t = jnp.dot(xb, awt_ref[...],
                                preferred_element_type=jnp.float32)        # (H, S)
                    cache_ref[...] = t.astype(jnp.bfloat16)
                else:
                    cache_ref[...] = xb

            ah = ah_ref[...]                                               # (ts, H) bf16
            if wide_first:
                y = jnp.dot(ah, cache_ref[...],
                            preferred_element_type=jnp.float32)            # (ts, S)
            else:
                t = jnp.dot(ah, cache_ref[...],
                            preferred_element_type=jnp.float32)            # (ts, W)
                y = jnp.dot(t.astype(jnp.bfloat16), awt_ref[...],
                            preferred_element_type=jnp.float32)            # (ts, S)
            # Fused ConvertImageDtype + Normalize: y/255/std - mean/std.
            o_ref[0] = (y * scale_ref[c] + bias_ref[c]).astype(o_ref.dtype)
        return kernel

    def kernel(scale_ref, bias_ref, x_ref, ah_ref, awt_ref, o_ref):
        c = pl.program_id(0)
        xb = convert(x_ref[0])                                             # (H, W) bf16
        ah = ah_ref[...]                                                   # (S, H)  bf16
        awt = awt_ref[...]                                                 # (W, S)  bf16
        if wide_first:
            # W > H: contract the wide axis first so the second matmul and the
            # intermediate use min(H, W).
            t = jnp.dot(xb, awt, preferred_element_type=jnp.float32)                        # (H, S)
            y = jnp.dot(ah, t.astype(jnp.bfloat16), preferred_element_type=jnp.float32)     # (S, S)
        else:
            t = jnp.dot(ah, xb, preferred_element_type=jnp.float32)                         # (S, W)
            y = jnp.dot(t.astype(jnp.bfloat16), awt, preferred_element_type=jnp.float32)    # (S, S)
        o_ref[0] = (y * scale_ref[c] + bias_ref[c]).astype(o_ref.dtype)
    return kernel


def transform(x_u8, image_size, mean, std, *, row_tile=None, out_dtype=jnp.float32):
    """x_u8: (C, H, W) uint8 image. Returns (C, image_size, image_size) out_dtype."""
    C, H, W = x_u8.shape
    assert x_u8.dtype == jnp.uint8
    S = int(image_size)

    gen = _tpu_generation()
    bf16_convert = gen in ("v6", "v7")     # v5e/unknown: keep f32 conversion path

    A_h_np, A_wT_np = _build_matrices(H, W, S)
    A_h = jnp.asarray(A_h_np, dtype=jnp.bfloat16)     # (S, H)
    A_wT = jnp.asarray(A_wT_np, dtype=jnp.bfloat16)   # (W, S)

    mean_np = np.asarray(mean, dtype=np.float64)
    std_np = np.asarray(std, dtype=np.float64)
    scale = jnp.asarray(1.0 / (255.0 * std_np), dtype=jnp.float32)   # (C,)
    bias = jnp.asarray(-mean_np / std_np, dtype=jnp.float32)         # (C,)

    ts = int(row_tile) if row_tile is not None else _pick_row_tile(S, H, W, gen)
    assert S % ts == 0 and (ts == S or ts % 16 == 0)
    rb = S // ts

    wide_first = W > H                     # legal for rb > 1 too (intermediate cached)
    use_cache = rb > 1                     # cache converted image / intermediate

    flops = 2 * C * ((H * W * S + S * S * H) if wide_first
                     else (S * H * W + S * S * W))
    out_bytes = C * S * S * jnp.dtype(out_dtype).itemsize
    bytes_accessed = C * H * W + 2 * (C * S * H + W * S) + out_bytes + 8 * C

    # Per-generation scoped-VMEM handling (incl. conversion temporaries).
    est_vmem = _estimate_vmem(H, W, S, ts, wide_first=wide_first, cached=use_cache,
                              bf16_convert=bf16_convert)
    default_scoped = (16 << 20) if gen == "v5" else (32 << 20)
    phys = _vmem_capacity_bytes(gen)
    cap = max(default_scoped, min(phys - (16 << 20), 96 << 20))   # ~48 MiB on v7x
    vmem_limit = (None if est_vmem <= int(0.75 * default_scoped)
                  else int(min(max(int(1.5 * est_vmem), default_scoped), cap)))
    # TODO(synk): banded-K tiling (per-output-row-block band of input rows via
    # scalar-prefetched offsets) for HD/4K inputs so a full channel never has to
    # stay resident; that is the real fix for v7x's 64 MiB VMEM instead of
    # raising the scoped limit.

    scratch_shapes = []
    if use_cache:
        cache_shape = (H, S) if wide_first else (H, W)
        scratch_shapes.append(pltpu.VMEM(cache_shape, jnp.bfloat16))

    # NOTE: with the cache the row-block axis MUST be "arbitrary" (megacore may
    # only split the channel axis); with C=3 a 2:1 split on v7x is accepted in
    # exchange for not redoing the conversion / first matmul per row block.
    dim_sem = ("parallel", "arbitrary") if use_cache else ("parallel", "parallel")

    return pl.pallas_call(
        _make_transform_kernel(wide_first, use_cache, bf16_convert),
        out_shape=jax.ShapeDtypeStruct((C, S, S), out_dtype),
        grid_spec=pltpu.PrefetchScalarGridSpec(
            num_scalar_prefetch=2,                 # scale, bias -> SMEM
            grid=(C, rb),                          # channels x output-row blocks
            in_specs=[
                pl.BlockSpec((1, H, W), lambda c, r, sc, bi: (c, 0, 0)),   # u8 image
                pl.BlockSpec((ts, H), lambda c, r, sc, bi: (r, 0)),        # A_h rows
                _single_buffered_spec((W, S), lambda c, r, sc, bi: (0, 0)),  # A_w^T
            ],
            out_specs=pl.BlockSpec((1, ts, S), lambda c, r, sc, bi: (c, r, 0)),
            scratch_shapes=scratch_shapes,
        ),
        compiler_params=pltpu.CompilerParams(
            dimension_semantics=dim_sem,
            vmem_limit_bytes=vmem_limit),
        cost_estimate=pl.CostEstimate(
            flops=flops, transcendentals=0, bytes_accessed=bytes_accessed),
    )(scale, bias, x_u8, A_h, A_wT)


# ----------------------------------------------------------------------------
# Pure numpy reference (f64) for validation of the bf16 kernel.
# ----------------------------------------------------------------------------
def _reference(x_u8_np, image_size, mean, std):
    C, H, W = x_u8_np.shape
    A_h, A_wT = _build_matrices(H, W, image_size)
    x = x_u8_np.astype(np.float64) / 255.0
    y = np.einsum("sh,chw,wt->cst", A_h.astype(np.float64), x,
                  A_wT.astype(np.float64))
    mean = np.asarray(mean, dtype=np.float64).reshape(-1, 1, 1)
    std = np.asarray(std, dtype=np.float64).reshape(-1, 1, 1)
    return (y - mean) / std


if __name__ == "__main__":
    key = jax.random.PRNGKey(0)
    k1, k2, k3 = jax.random.split(key, 3)
    mean = [0.48145466, 0.4578275, 0.40821073]
    std = [0.26862954, 0.26130258, 0.27577711]

    # Case 1: wide image (W > H), single row block -> uncached wide-first path.
    x1 = jax.random.randint(k1, (3, 20, 24), 0, 256, dtype=jnp.int32).astype(jnp.uint8)
    out1 = jax.block_until_ready(transform(x1, 16, mean, std))

    # Case 2: tall image, explicit row split -> cached converted-channel path.
    x2 = jax.random.randint(k2, (3, 48, 40), 0, 256, dtype=jnp.int32).astype(jnp.uint8)
    out2 = jax.block_until_ready(transform(x2, 32, mean, std, row_tile=16))

    # Case 3: wide image, explicit row split -> cached wide-first intermediate.
    x3 = jax.random.randint(k3, (3, 40, 56), 0, 256, dtype=jnp.int32).astype(jnp.uint8)
    out3 = jax.block_until_ready(transform(x3, 32, mean, std, row_tile=16))

    for x, s, out in ((x1, 16, out1), (x2, 32, out2), (x3, 32, out3)):
        assert out.shape == (3, s, s) and out.dtype == jnp.float32
        ref = _reference(np.asarray(x), s, mean, std)
        err = float(np.max(np.abs(np.asarray(out, dtype=np.float64) - ref)))
        assert err < 0.12, f"max abs err {err} vs f64 reference"
    print("KERNEL_OK")
</pallas_src>

<mosaic_0001>
module attributes {stable_mosaic.version = 11 : i64} {
  func.func @kernel(%arg0: i32, %arg1: i32, %arg2: memref<3xf32, #tpu.memory_space<smem>>, %arg3: memref<3xf32, #tpu.memory_space<smem>>, %arg4: memref<1x20x24xi8, #tpu.memory_space<vmem>>, %arg5: memref<16x20xbf16, #tpu.memory_space<vmem>>, %arg6: memref<24x16xbf16, #tpu.memory_space<vmem>>, %arg7: memref<1x16x16xf32, #tpu.memory_space<vmem>>) attributes {dimension_semantics = [#tpu.dimension_semantics<parallel>, #tpu.dimension_semantics<parallel>], iteration_bounds = array<i64: 3, 1>, scalar_prefetch = 2 : i64, scratch_operands = 0 : i64, tpu.core_type = #tpu.core_type<tc>, window_params = [{transform_indices = @transform_0, window_bounds = array<i64: 1, 20, 24>}, {transform_indices = @transform_1, window_bounds = array<i64: 16, 20>}, {pipeline_mode = #tpu.pipeline_mode<synchronous>, transform_indices = @transform_2, window_bounds = array<i64: 24, 16>}, {transform_indices = @transform_3, window_bounds = array<i64: 1, 16, 16>}]} {
    %c0 = arith.constant 0 : index
    %c0_0 = arith.constant 0 : index
    %c0_1 = arith.constant 0 : index
    %0 = vector.load %arg4[%c0, %c0_0, %c0_1] : memref<1x20x24xi8, #tpu.memory_space<vmem>>, vector<1x20x24xi8>
    %1 = vector.shape_cast %0 : vector<1x20x24xi8> to vector<20x24xi8>
    %2 = tpu.bitcast %1 : vector<20x24xi8> -> vector<20x24xi8>
    %3 = arith.sitofp %2 : vector<20x24xi8> to vector<20x24xf32>
    %cst = arith.constant 0.000000e+00 : f32
    %4 = vector.broadcast %cst : f32 to vector<20x24xf32>
    %5 = arith.cmpf olt, %3, %4 : vector<20x24xf32>
    %cst_2 = arith.constant 2.560000e+02 : f32
    %6 = vector.broadcast %cst_2 : f32 to vector<20x24xf32>
    %7 = arith.addf %3, %6 : vector<20x24xf32>
    %8 = arith.select %5, %7, %3 : vector<20x24xi1>, vector<20x24xf32>
    %9 = arith.truncf %8 : vector<20x24xf32> to vector<20x24xbf16>
    %c0_3 = arith.constant 0 : index
    %c0_4 = arith.constant 0 : index
    %10 = vector.load %arg5[%c0_3, %c0_4] : memref<16x20xbf16, #tpu.memory_space<vmem>>, vector<16x20xbf16>
    %c0_5 = arith.constant 0 : index
    %c0_6 = arith.constant 0 : index
    %11 = vector.load %arg6[%c0_5, %c0_6] : memref<24x16xbf16, #tpu.memory_space<vmem>>, vector<24x16xbf16>
    %cst_7 = arith.constant dense<0.000000e+00> : vector<20x16xf32>
    %12 = tpu.matmul %9, %11, %cst_7 {dimension_numbers = #tpu.dot_dimension_numbers<[1], [0], [0], [1], [0, 0, 1, 1], [], []>} : vector<20x24xbf16>, vector<24x16xbf16>, vector<20x16xf32> -> vector<20x16xf32>
    %13 = arith.truncf %12 : vector<20x16xf32> to vector<20x16xbf16>
    %cst_8 = arith.constant dense<0.000000e+00> : vector<16x16xf32>
    %14 = tpu.matmul %10, %13, %cst_8 {dimension_numbers = #tpu.dot_dimension_numbers<[1], [0], [0], [1], [0, 0, 1, 1], [], []>} : vector<16x20xbf16>, vector<20x16xbf16>, vector<16x16xf32> -> vector<16x16xf32>
    %15 = arith.index_cast %arg0 : i32 to index
    %16 = memref.load %arg2[%15] : memref<3xf32, #tpu.memory_space<smem>>
    %17 = vector.broadcast %16 : f32 to vector<16x16xf32>
    %18 = arith.mulf %14, %17 : vector<16x16xf32>
    %19 = arith.index_cast %arg0 : i32 to index
    %20 = memref.load %arg3[%19] : memref<3xf32, #tpu.memory_space<smem>>
    %21 = vector.broadcast %20 : f32 to vector<16x16xf32>
    %22 = arith.addf %18, %21 : vector<16x16xf32>
    %c0_9 = arith.constant 0 : index
    %c0_10 = arith.constant 0 : index
    %c0_11 = arith.constant 0 : index
    %23 = vector.load %arg7[%c0_9, %c0_10, %c0_11] : memref<1x16x16xf32, #tpu.memory_space<vmem>>, vector<1x16x16xf32>
    %24 = vector.shape_cast %23 : vector<1x16x16xf32> to vector<16x16xf32>
    %25 = vector.shape_cast %22 : vector<16x16xf32> to vector<1x16x16xf32>
    tpu.vector_store %arg7[%c0_9, %c0_10, %c0_11], %25 {strides = array<i32>} : memref<1x16x16xf32, #tpu.memory_space<vmem>>, vector<1x16x16xf32>,
    return
  }
  func.func @transform_0(%arg0: i32, %arg1: i32, %arg2: memref<3xf32, #tpu.memory_space<smem>>, %arg3: memref<3xf32, #tpu.memory_space<smem>>) -> (i32, i32, i32) {
    %c0_i32 = arith.constant 0 : i32
    %c0_i32_0 = arith.constant 0 : i32
    %c0_i32_1 = arith.constant 0 : i32
    return %arg0, %c0_i32, %c0_i32_0 : i32, i32, i32
  }
  func.func @transform_1(%arg0: i32, %arg1: i32, %arg2: memref<3xf32, #tpu.memory_space<smem>>, %arg3: memref<3xf32, #tpu.memory_space<smem>>) -> (i32, i32) {
    %c0_i32 = arith.constant 0 : i32
    %c0_i32_0 = arith.constant 0 : i32
    return %arg1, %c0_i32 : i32, i32
  }
  func.func @transform_2(%arg0: i32, %arg1: i32, %arg2: memref<3xf32, #tpu.memory_space<smem>>, %arg3: memref<3xf32, #tpu.memory_space<smem>>) -> (i32, i32) {
    %c0_i32 = arith.constant 0 : i32
    %c0_i32_0 = arith.constant 0 : i32
    %c0_i32_1 = arith.constant 0 : i32
    return %c0_i32, %c0_i32_0 : i32, i32
  }
  func.func @transform_3(%arg0: i32, %arg1: i32, %arg2: memref<3xf32, #tpu.memory_space<smem>>, %arg3: memref<3xf32, #tpu.memory_space<smem>>) -> (i32, i32, i32) {
    %c0_i32 = arith.constant 0 : i32
    %c0_i32_0 = arith.constant 0 : i32
    return %arg0, %arg1, %c0_i32 : i32, i32, i32
  }
}

</mosaic_0001>

<llo_original>
// kernel: tpu_custom_call.1
$region0: #{tpu_custom_call.1}
  #allocation0 [shape = 'u32[]', space=smem, size = 0x4, offset = 0x4, fixed_abs, tag = 'smem constant byte address 0x4 - core index']
  #allocation1 [shape = 'u32[72,128]{1,0:T(1,128)}', space=vmem, size = 0x9000, scoped, tag = 'internal scratch']
  #allocation2 [shape = 's32[1]{0}', space=sflag, size = 0x4, scoped, tag = 'scoped memory for tpu_custom_call.1']
  #allocation3 [shape = 'u8[512]{0}', space=smem, size = 0x200, scoped, tag = 'prefetched SMEM operand 0']
  #allocation4 [shape = 'u8[512]{0}', space=smem, size = 0x200, scoped, tag = 'prefetched SMEM operand 1']
  %s0 = inlined_call_operand.vmem [shape: f32[3], index: 0, kind: input, shape index: {}]
  %s1 = inlined_call_operand.vmem [shape: f32[3], index: 1, kind: input, shape index: {}]
  %s2 = inlined_call_operand.vmem [shape: u8[3,20,24], index: 2, kind: input, shape index: {}]
  %s3 = inlined_call_operand.hbm [shape: bf16[16,20], index: 3, kind: input, shape index: {}]
  %s4 = inlined_call_operand.vmem [shape: bf16[24,16], index: 4, kind: input, shape index: {}]
  %s5 = inlined_call_operand.hbm [shape: f32[3,16,16], index: 5, kind: output, shape index: {}]
  %s6 = sld [smem:[#allocation0]]
  $region49: #{tpu_custom_call.1} parent=0
    _
  %s8 = ssub.s32 1, %s6
  %s9 = scalar_select 0, %s8, %s6
  %s11 = sshll.u32 %s0, 4
  %s12 = int_to_ptr.vmem [resolvable:$true] %s11
  %14 = dma.vmem_to_smem %s12, 16, [#allocation3], [#allocation2]
  %s16 = sshll.u32 %s1, 4
  %s17 = int_to_ptr.vmem [resolvable:$true] %s16
  %19 = dma.vmem_to_smem %s17, 16, [#allocation4], [#allocation2]
  %21 = dma.done [#allocation2], 32
  %22 = sfence
  $region1: #{tpu_custom_call.1} parent=0
    #allocation5 [shape = 'u8[4096]{0}', space=vmem, size = 0x1000, scoped, tag = 'input window, operand 3, single buffered']
    #allocation6 [shape = 's32[2]{0}', space=sflag, size = 0x8, scoped, tag = 'scoped memory for tpu_custom_call.1']
    #allocation7 [shape = 's32[2]{0}', space=sflag, size = 0x8, scoped, tag = 'scoped memory for tpu_custom_call.1']
    #allocation8 [shape = 'u8[16384]{0}', space=vmem, size = 0x4000, scoped, tag = 'output window, operand 0']
    %23 = vsyncpa [#allocation6], 0
    %24 = vsyncpa [#allocation7], 0
    %s25 = scalar_lea.sflag [#allocation7], 1
    %26 = vsyncpa %s25, 0
    loop: start=0, step=1, limit=5
    $region2: #{tpu_custom_call.1} parent=1 // loop_pre_header
      _
    $region3: #{tpu_custom_call.1} parent=1 // loop_header
      %s28 = sphi 0, %s32
      %p29 = scmp.ge.s32.totalorder %s28, 5
      %s35 = sphi 0, %s47
      %s36 = sphi 0, %s43
      %s37 = sphi 0, %s35
      %s38 = sphi 0, %s36
      %s39 = sphi 0, %s37
      %s40 = sphi 0, %s38
      %s50 = sphi 0, %s52
      %s53 = sphi 0, %s50
      %s54 = sphi 0, %s53
      %s70 = sphi 0, %s54
      %s76 = sphi 0, %s78
      %s79 = sphi 0, %s76
      %s80 = sphi 0, %s79
      %s96 = sphi 0, %s80
      %s100 = sphi 0, %s100
      %s102 = sphi 0, %s100
      %s103 = sphi 0, %s102
      %s117 = sphi 0, %s103
      %s125 = sphi 0, %s127
      %s128 = sphi 0, %s125
      %s129 = sphi 0, %s128
      %s145 = sphi 0, %s129
    $region4: #{tpu_custom_call.1} parent=1 // loop_header_branch
      %31 = sbr.rel (%p29) target = $region8
    $region5: #{tpu_custom_call.1} parent=1 // loop_body
      %s33 = ssub.s32 %s28, 1
      %s34 = ssub.s32 %s28, 2
      %s41 = sadd.s32 1, %s36
      %p42 = scmp.ge.s32.totalorder %s41, 1
      %s43 = scalar_select %p42, 0, %s41
      %s44 = sadd.s32 1, %s35
      %s45 = scalar_select %p42, %s44, %s35
      %p46 = scmp.ge.s32.totalorder %s45, 3
      %s47 = scalar_select %p46, 0, %s45
      %s48 = ssub.s32 %s35, %s47
      %p49 = scmp.eq.s32.totalorder %s48, 0
      %s51 = sadd.s32 %s50, 1
      %s52 = scalar_select %p49, %s50, %s51
      %p55 = pneg %p49
      %p56 = scmp.eq.s32.totalorder %s28, 2
      %p57 = por %p55, %p56
      %p58 = scmp.ne.s32.totalorder %s50, %s53
      %p59 = scmp.eq.s32.totalorder %s28, 0
      %p60 = por %p58, %p59
      %p61 = scmp.ne.s32.totalorder %s50, %s53
      %p62 = scmp.eq.s32.totalorder %s33, 2
      %p63 = por %p61, %p62
      %p64 = scmp.ne.s32.totalorder %s53, %s54
      %p65 = scmp.eq.s32.totalorder %s33, 0
      %p66 = por %p64, %p65
      %p67 = scmp.ne.s32.totalorder %s53, %s54
      %p68 = scmp.eq.s32.totalorder %s34, 2
      %p69 = por %p67, %p68
      %p71 = scmp.ne.s32.totalorder %s54, %s70
      %p72 = scmp.eq.s32.totalorder %s34, 0
      %p73 = por %p71, %p72
      %s74 = ssub.s32 %s36, %s43
      %p75 = scmp.eq.s32.totalorder %s74, 0
      %s77 = sadd.s32 %s76, 1
      %s78 = scalar_select %p75, %s76, %s77
      %p81 = pneg %p75
      %p82 = scmp.eq.s32.totalorder %s28, 2
      %p83 = por %p81, %p82
      %p84 = scmp.ne.s32.totalorder %s76, %s79
      %p85 = scmp.eq.s32.totalorder %s28, 0
      %p86 = por %p84, %p85
      %p87 = scmp.ne.s32.totalorder %s76, %s79
      %p88 = scmp.eq.s32.totalorder %s33, 2
      %p89 = por %p87, %p88
      %p90 = scmp.ne.s32.totalorder %s79, %s80
      %p91 = scmp.eq.s32.totalorder %s33, 0
      %p92 = por %p90, %p91
      %p93 = scmp.ne.s32.totalorder %s79, %s80
      %p94 = scmp.eq.s32.totalorder %s34, 2
      %p95 = por %p93, %p94
      %p97 = scmp.ne.s32.totalorder %s80, %s96
      %p98 = scmp.eq.s32.totalorder %s34, 0
      %p99 = por %p97, %p98
      %s101 = sadd.s32 %s100, 1
      %p104 = scmp.eq.s32.totalorder %s28, 2
      %p105 = scmp.ne.s32.totalorder %s100, %s102
      %p106 = scmp.eq.s32.totalorder %s28, 0
      %p107 = por %p105, %p106
      %p108 = scmp.ne.s32.totalorder %s100, %s102
      %p109 = scmp.eq.s32.totalorder %s33, 2
      %p110 = por %p108, %p109
      %p111 = scmp.ne.s32.totalorder %s102, %s103
      %p112 = scmp.eq.s32.totalorder %s33, 0
      %p113 = por %p111, %p112
      %p114 = scmp.ne.s32.totalorder %s102, %s103
      %p115 = scmp.eq.s32.totalorder %s34, 2
      %p116 = por %p114, %p115
      %p118 = scmp.ne.s32.totalorder %s103, %s117
      %p119 = scmp.eq.s32.totalorder %s34, 0
      %p120 = por %p118, %p119
      %s121 = ssub.s32 %s35, %s47
      %s122 = ssub.s32 %s36, %s43
      %s123 = sor.u32 %s121, %s122
      %p124 = scmp.eq.s32.totalorder %s123, 0
      %s126 = sadd.s32 %s125, 1
      %s127 = scalar_select %p124, %s125, %s126
      %p130 = pneg %p124
      %p131 = scmp.eq.s32.totalorder %s28, 2
      %p132 = por %p130, %p131
      %p133 = scmp.ne.s32.totalorder %s125, %s128
      %p134 = scmp.eq.s32.totalorder %s28, 0
      %p135 = por %p133, %p134
      %p136 = scmp.ne.s32.totalorder %s125, %s128
      %p137 = scmp.eq.s32.totalorder %s33, 2
      %p138 = por %p136, %p137
      %p139 = scmp.ne.s32.totalorder %s128, %s129
      %p140 = scmp.eq.s32.totalorder %s33, 0
      %p141 = por %p139, %p140
      %p142 = scmp.ne.s32.totalorder %s128, %s129
      %p143 = scmp.eq.s32.totalorder %s34, 2
      %p144 = por %p142, %p143
      %p146 = scmp.ne.s32.totalorder %s129, %s145
      %p147 = scmp.eq.s32.totalorder %s34, 0
      %p148 = por %p146, %p147
      %p149 = scmp.le.s32.totalorder 1, %s28
      %p150 = scmp.lt.s32.totalorder %s28, 4
      %p151 = pnand %p149, %p150
      %p152 = pneg %p151
      // Predicated region
      $region9: #{tpu_custom_call.1} parent=5 // pred_check
        _
      $region10: #{tpu_custom_call.1} parent=5 // pred_check_branch
        %154 = sbr.rel (%p151) target = $region12
      $region11: #{tpu_custom_call.1} parent=5 // pred_region
        %s155 = ssub.s32 %s28, 1
        // Predicated region
        $region13: #{tpu_custom_call.1} parent=11 // pred_check
          %p156 = pneg %p92
        $region14: #{tpu_custom_call.1} parent=11 // pred_check_branch
          %158 = sbr.rel (%p156) target = $region16
        $region15: #{tpu_custom_call.1} parent=11 // pred_region
          %s159 = smul.u32 2, %s38
          %161 = vsyncadd [#allocation6], 0
          %s162 = smul.addr %s159, 4
          %s163 = scalar_lea.hbm %s3, %s162
          %s164 = sshll.u32 %s163, 4
          %s165 = int_to_ptr.hbm [resolvable:$true] %s164
          %s166 = sshll.u32 [#allocation5], 4
          %s167 = int_to_ptr.vmem [resolvable:$true] %s166
          %172 = dma.hbm_to_vmem [thread:$0]  %s165, 128, %s167, [#allocation6], 64, 64, 4
        $region16: #{tpu_custom_call.1} parent=11 // pred_fallthru
          _
        // Predicated region
        $region17: #{tpu_custom_call.1} parent=11 // pred_check
          %p173 = pneg %p113
        $region18: #{tpu_custom_call.1} parent=11 // pred_check_branch
          %175 = sbr.rel (%p173) target = $region20
        $region19: #{tpu_custom_call.1} parent=11 // pred_region
          _
        $region20: #{tpu_custom_call.1} parent=11 // pred_fallthru
          _
      $region12: #{tpu_custom_call.1} parent=5 // pred_fallthru
        _
      %p176 = scmp.lt.s32.totalorder %s28, 3
      // Predicated region
      $region21: #{tpu_custom_call.1} parent=5 // pred_check
        %p177 = pneg %p176
      $region22: #{tpu_custom_call.1} parent=5 // pred_check_branch
        %179 = sbr.rel (%p177) target = $region24
      $region23: #{tpu_custom_call.1} parent=5 // pred_region
        // Predicated region
        $region25: #{tpu_custom_call.1} parent=23 // pred_check
          %p180 = pneg %p60
        $region26: #{tpu_custom_call.1} parent=23 // pred_check_branch
          %182 = sbr.rel (%p180) target = $region28
        $region27: #{tpu_custom_call.1} parent=23 // pred_region
          %p183 = scmp.lt.s32.totalorder %s35, 2
          %s184 = scalar_select %p183, %s35, 2
          %s185 = smul.addr %s184, 3
          %s186 = smul.addr %s185, 2
          %s187 = scalar_lea.vmem %s2, %s186
        $region28: #{tpu_custom_call.1} parent=23 // pred_fallthru
          _
      $region24: #{tpu_custom_call.1} parent=5 // pred_fallthru
        _
      %p188 = scmp.le.s32.totalorder 1, %s28
      %p189 = scmp.lt.s32.totalorder %s28, 4
      %p190 = pnand %p188, %p189
      %p191 = pneg %p190
      // Predicated region
      $region29: #{tpu_custom_call.1} parent=5 // pred_check
        _
      $region30: #{tpu_custom_call.1} parent=5 // pred_check_branch
        %193 = sbr.rel (%p190) target = $region32
      $region31: #{tpu_custom_call.1} parent=5 // pred_region
        %s194 = ssub.s32 %s28, 1
        // Predicated region
        $region33: #{tpu_custom_call.1} parent=31 // pred_check
          %p195 = pneg %p92
        $region34: #{tpu_custom_call.1} parent=31 // pred_check_branch
          %197 = sbr.rel (%p195) target = $region36
        $region35: #{tpu_custom_call.1} parent=31 // pred_region
          %199 = dma.done [#allocation6], 128
        $region36: #{tpu_custom_call.1} parent=31 // pred_fallthru
          _
        %p200 = scmp.lt.s32.totalorder %s37, 2
        %s201 = scalar_select %p200, %s37, 2
        %s202 = smul.addr %s201, 3
        %s203 = smul.addr %s202, 2
        %s204 = scalar_lea.vmem %s2, %s203
        %p205 = pneg %p66
        %p206 = pneg %p63
        %p207 = pneg %p92
        %p208 = pneg %p89
        %p209 = pneg %p113
        %p210 = pneg %p110
        %p211 = pneg %p141
        %p212 = pneg %p138
        %s213 = sand.u32 %s128, 1
        %s214 = scalar_lea.sflag [#allocation7], %s213
        %s215 = sand.u32 %s128, 1
        %s216 = smul.addr %s215, 16
        %s217 = scalar_lea.vmem [#allocation8], %s216
        %p218 = scmp.lt.s32.totalorder %s37, 2
        %s219 = scalar_select %p218, %s37, 2
        %s220 = smul.addr %s219, 3
        %s221 = smul.addr %s220, 2
        %s222 = scalar_lea.vmem %s2, %s221
        %s223 = smul.u32 2, %s38
        %s224 = smul.u32 2, %s38
        %v226 = vld [vmem:[%s222] sm:$0x3]
        %v227 = vld [vmem:[%s222 + $0x2] sm:$0x3]
        %v228 = vld [vmem:[%s222 + $0x4] sm:$0x1]
        %v229 = vunpack.c.0.s8 %v226
        %v230 = vunpack.c.0.s8 %v227
        %v231 = vunpack.c.0.s8 %v228
        %v232 = vpack.c.b16 %v230, %v229
        %v233 = vpack.c.b16 %v231, %v231
        %v234 = vpack.c.b8 %v233, %v232
        %v235 = vunpack.c.0.s8 %v234
        %v236 = vunpack.c.1.s8 %v234
        %v237 = vunpack.c.2.s8 %v234
        %v238 = vcvt.s32.f32 %v235
        %v239 = vcvt.s32.f32 %v236
        %v240 = vcvt.s32.f32 %v237
        %vm241 = vcmp.lt.f32.partialorder %v238, 0.0
        %vm242 = vcmp.lt.f32.partialorder %v239, 0.0
        %vm243 = vcmp.lt.f32.partialorder %v240, 0.0
        %v244 = vadd.f32 %v238, 256.0
        %v245 = vadd.f32 %v239, 256.0
        %v246 = vadd.f32 %v240, 256.0
        %v247 = vsel %vm241, %v244, %v238
        %v248 = vsel %vm242, %v245, %v239
        %v249 = vsel %vm243, %v246, %v240
        %v250 = vpack.c.bf16 %v248, %v247
        %v251 = vpack.c.bf16 %v249, %v249
        %v252 = vld [vmem:[#allocation5] sm:$0xf]
        %v253 = vld [vmem:[#allocation5 + $0x4] sm:$0xf]
        %v254 = vld [vmem:[%s4] sm:$0xf]
        %v255 = vld [vmem:[%s4 + $0x4] sm:$0xf]
        %v256 = vld [vmem:[%s4 + $0x8] sm:$0xf]
        %v260 = vunpack.c.l.b16 %v254
        %v261 = vunpack.c.l.b16 %v255
        %v262 = vunpack.c.l.b16 %v256
        %v263 = vpack.c.b16 %v261, %v260
        %v264 = vpack.c.b16 %v262, %v262
        %vm266 = vcmask 195584
        %v268 = vsel %vm266, %v250, 0
        %v271 = vsel %vm266, %v251, 0
        %vm273 = vcmask 1043456
        %v275 = vsel %vm273, %v264, 0
        %277 = vmatpush.bf16.msra.mxu0 0
        %278 = vmatpush.bf16.msra.mxu0 0
        %279 = vmatpush.bf16.msra.mxu0 0
        %280 = vmatpush.bf16.msra.mxu0 0
        %281 = vmatpush.bf16.msra.mxu0 0
        %282 = vmatpush.bf16.msra.mxu0 0
        %283 = vmatpush.bf16.msra.mxu0 %v275
        %284 = vmatpush.bf16.msra.mxu0 %v263
        %285 = vmatmul.bf16.gmra.mxu0 %v268
        %v286 = vpop.f32.mrf.mxu0
        %v287 = vadd.f32 0.0, %v286
        %v288 = vpop.f32.mrf.mxu0
        %v289 = vadd.f32 0.0, %v288
        %290 = vmatmul.bf16.gmra.mxu0 %v271
        %v291 = vpop.f32.mrf.mxu0
        %v292 = vadd.f32 0.0, %v291
        %v293 = vpop.f32.mrf.mxu0
        %294 = vdwg.mxu0
        %v295 = vpack.c.bf16 %v289, %v287
        %v296 = vpack.c.bf16 %v292, %v292
        %v299 = vunpack.c.l.b16 %v252
        %v300 = vunpack.c.l.b16 %v253
        %v301 = vpack.c.b16 %v300, %v299
        %vm302 = vcmask 162816
        %v304 = vsel %vm302, %v301, 0
        %vm306 = vcmask 1041408
        %v308 = vsel %vm306, %v296, 0
        %310 = vmatpush.bf16.msra.mxu0 0
        %311 = vmatpush.bf16.msra.mxu0 0
        %312 = vmatpush.bf16.msra.mxu0 0
        %313 = vmatpush.bf16.msra.mxu0 0
        %314 = vmatpush.bf16.msra.mxu0 0
        %315 = vmatpush.bf16.msra.mxu0 0
        %316 = vmatpush.bf16.msra.mxu0 %v308
        %317 = vmatpush.bf16.msra.mxu0 %v295
        %318 = vmatmul.bf16.gmra.mxu0 %v304
        %v319 = vpop.f32.mrf.mxu0
        %v320 = vadd.f32 0.0, %v319
        %v321 = vpop.f32.mrf.mxu0
        %v322 = vadd.f32 0.0, %v321
        %323 = vdwg.mxu0
        %s324 = sld [smem:[#allocation3 + %s37]]
        %v325 = vstv %s324
        %v326 = vmul.f32 %v320, %v325
        %v327 = vmul.f32 %v322, %v325
        %s328 = sld [smem:[#allocation4 + %s37]]
        %v329 = vstv %s328
        %v330 = vadd.f32 %v326, %v329
        %v331 = vadd.f32 %v327, %v329
        %vm332 = vcmask 130048
        %333 = vst.msk [vmem:[%s217] sm:$0xff] %vm332, %v330
        %334 = vst.msk [vmem:[%s217 + $0x8] sm:$0xff] %vm332, %v331
        %s335 = sand.u32 %s128, 1
        %s336 = scalar_lea.sflag [#allocation7], %s335
        %s337 = sand.u32 %s128, 1
        %s338 = smul.addr %s337, 16
        %s339 = scalar_lea.vmem [#allocation8], %s338
        // Predicated region
        $region37: #{tpu_custom_call.1} parent=31 // pred_check
          %p340 = pneg %p138
        $region38: #{tpu_custom_call.1} parent=31 // pred_check_branch
          %342 = sbr.rel (%p340) target = $region40
        $region39: #{tpu_custom_call.1} parent=31 // pred_region
          %s343 = smul.u32 2, %s38
          %345 = vsyncadd %s336, 0
          %s346 = smul.addr %s37, 2
          %s347 = sadd.s32 %s343, %s346
          %s348 = smul.addr %s347, 8
          %s349 = scalar_lea.hbm %s5, %s348
          %s350 = sshll.u32 %s339, 4
          %s351 = int_to_ptr.vmem [resolvable:$true] %s350
          %s352 = sshll.u32 %s349, 4
          %s353 = int_to_ptr.hbm [resolvable:$true] %s352
          %358 = dma.vmem_to_hbm [thread:$0]  %s351, 256, %s353, %s336, 128, 128, 8
        $region40: #{tpu_custom_call.1} parent=31 // pred_fallthru
          _
      $region32: #{tpu_custom_call.1} parent=5 // pred_fallthru
        _
      %p359 = scmp.le.s32.totalorder 2, %s28
      // Predicated region
      $region41: #{tpu_custom_call.1} parent=5 // pred_check
        %p360 = pneg %p359
      $region42: #{tpu_custom_call.1} parent=5 // pred_check_branch
        %362 = sbr.rel (%p360) target = $region44
      $region43: #{tpu_custom_call.1} parent=5 // pred_region
        %s363 = ssub.s32 %s28, 2
        // Predicated region
        $region45: #{tpu_custom_call.1} parent=43 // pred_check
          %p364 = pneg %p144
        $region46: #{tpu_custom_call.1} parent=43 // pred_check_branch
          %366 = sbr.rel (%p364) target = $region48
        $region47: #{tpu_custom_call.1} parent=43 // pred_region
          %s367 = sand.u32 %s129, 1
          %s368 = scalar_lea.sflag [#allocation7], %s367
          %s369 = sand.u32 %s129, 1
          %s370 = smul.addr %s369, 16
          %s371 = scalar_lea.vmem [#allocation8], %s370
          %373 = dma.done %s368, 256
        $region48: #{tpu_custom_call.1} parent=43 // pred_fallthru
          _
      $region44: #{tpu_custom_call.1} parent=5 // pred_fallthru
        _
    $region6: #{tpu_custom_call.1} parent=1 // loop_footer
      %s32 = sadd.s32 1, %s28
    $region7: #{tpu_custom_call.1} parent=1 // loop_footer_branch
      %27 = sbr.rel target = $region3
    $region8: #{tpu_custom_call.1} parent=1 // loop_exit
      _
    %374 = vsyncpa [#allocation6], 1
    %s375 = scalar_lea.sflag [#allocation6], 1
    %376 = vsyncpa %s375, 1
    %377 = vsyncpa [#allocation7], 1
    %s378 = scalar_lea.sflag [#allocation7], 1
    %379 = vsyncpa %s378, 1

</llo_original>
